<compile_context>
chip_gen: v7x
topology: tpu7x:2x2x1
jax: 0.10.0
libtpu: 0.0.40
codegen_flags: <defaults>
</compile_context>

<pallas_src>
import jax
import jax.numpy as jnp
from jax.experimental import pallas as pl
from jax.experimental.pallas import tpu as pltpu


# --------------------------------------------------------------------------- #
# Kernels
# --------------------------------------------------------------------------- #
def _mirt_packed_kernel(p_ref, d_ref, beta_ref, g_ref, o_ref):
    # p/d blocks: (rows, 128), lane-dense; each row packs P = 128 // K items.
    prod = p_ref[...].astype(jnp.float32) * d_ref[...].astype(jnp.float32)
    # Per-item sums via the MXU against a constant block-diagonal group matrix
    # (keeps VPU/XLU free; one small matmul per block instead of per-vreg
    # cross-lane reduces).
    dots = jnp.dot(prod, g_ref[...], preferred_element_type=jnp.float32)  # (rows, P)
    logits = dots + beta_ref[...].astype(jnp.float32)                     # (rows, P)
    o_ref[...] = jax.nn.sigmoid(logits).astype(o_ref.dtype)


def _mirt_rowdot_kernel(p_ref, d_ref, beta_ref, o_ref):
    # General-K fallback: reduction kept in its natural (rows, 1) layout so no
    # extra relayout is emitted; beta is fed as a (rows, 1) column.
    prod = p_ref[...].astype(jnp.float32) * d_ref[...].astype(jnp.float32)
    dots = jnp.sum(prod, axis=1, keepdims=True)                            # (rows, 1)
    logits = dots + beta_ref[...].astype(jnp.float32)
    o_ref[...] = jax.nn.sigmoid(logits).astype(o_ref.dtype)


# --------------------------------------------------------------------------- #
# Helpers
# --------------------------------------------------------------------------- #
def _round_up(x, m):
    return (x + m - 1) // m * m


def _cdiv(a, b):
    return (a + b - 1) // b


def _sublane(dtype):
    # Sublane multiple required for a non-full block dim of this dtype.
    return max(8, 32 // jnp.dtype(dtype).itemsize)


def _pick_block_rows(nrows, sublane, bytes_per_row, budget_bytes,
                     target_steps=4, min_rows=1024):
    """Largest row-block whose *lane-padded, double-buffered* footprint fits
    `budget_bytes`, while aiming for >= `target_steps` grid steps (megacore)."""
    cap = budget_bytes // (2 * bytes_per_row)            # x2: double buffering
    cap = max(sublane, cap // sublane * sublane)
    if nrows <= min(cap, min_rows):
        return nrows                                      # one full-extent block
    want = _cdiv(nrows, target_steps)
    rows = min(cap, max(min_rows, want))
    rows = max(sublane, rows // sublane * sublane)
    return min(rows, nrows)


# --------------------------------------------------------------------------- #
# Public forward
# --------------------------------------------------------------------------- #
def mirt_forward(p_u, d_v, beta_v, *,
                 block_bytes=12 * 1024 * 1024,
                 vmem_limit_bytes=32 * 1024 * 1024,
                 min_kernel_elements=16384):
    """Pallas MIRT forward: sigmoid(rowdot(p_u, d_v) + beta_v) -> (1, B)."""
    if p_u.ndim == 1:
        p_u = p_u[None, :]
    if d_v.ndim == 1:
        d_v = d_v[None, :]
    beta_flat = jnp.reshape(beta_v, (-1,))

    B, K = p_u.shape
    assert d_v.shape == (B, K)
    # TODO(synk): beta_v with a leading broadcast dim > 1 is not supported here
    # (standard MIRT uses one difficulty scalar per item).
    assert beta_flat.shape == (B,), "beta_v must hold exactly B elements"

    out_dtype = jnp.result_type(p_u.dtype, d_v.dtype, beta_flat.dtype)

    # Tiny problems: pallas_call fixed cost dominates -> plain jnp.
    if B * K < min_kernel_elements:
        dots = jnp.sum(p_u.astype(jnp.float32) * d_v.astype(jnp.float32), axis=-1)
        res = jax.nn.sigmoid(dots + beta_flat.astype(jnp.float32))
        return res.astype(out_dtype)[None, :]

    out_isz = jnp.dtype(out_dtype).itemsize
    in_bytes = p_u.dtype.itemsize + d_v.dtype.itemsize
    cost = pl.CostEstimate(
        flops=2 * B * K + 2 * B,
        transcendentals=B,
        bytes_accessed=B * K * in_bytes + B * (beta_flat.dtype.itemsize + out_isz),
    )
    cparams = pltpu.CompilerParams(
        dimension_semantics=("parallel",),
        vmem_limit_bytes=vmem_limit_bytes,
    )

    pack = 128 // K if (K <= 128 and 128 % K == 0) else 0
    if pack > 1 and B % pack == 0:
        # ---------------- lane-dense packed path ---------------------------
        rows_total = B // pack
        p2 = jnp.reshape(p_u, (rows_total, 128))          # contiguous (free) reshape
        d2 = jnp.reshape(d_v, (rows_total, 128))
        beta2 = jnp.reshape(beta_flat, (rows_total, pack))
        # Constant block-diagonal group-sum matrix: G[k, g] = 1 iff k // K == g.
        g_mat = (jnp.arange(128, dtype=jnp.int32)[:, None] // K
                 == jnp.arange(pack, dtype=jnp.int32)[None, :]).astype(jnp.float32)

        sub = max(_sublane(p2.dtype), _sublane(d2.dtype),
                  _sublane(beta2.dtype), _sublane(out_dtype))
        # Real VMEM bytes per block row: narrow beta/out blocks pad to 128 lanes.
        bytes_per_row = (128 * in_bytes
                         + 128 * beta2.dtype.itemsize
                         + 128 * out_isz)
        rows = _pick_block_rows(rows_total, sub, bytes_per_row, block_bytes)
        grid = (_cdiv(rows_total, rows),)

        out = pl.pallas_call(
            _mirt_packed_kernel,
            out_shape=jax.ShapeDtypeStruct((rows_total, pack), out_dtype),
            grid=grid,
            in_specs=[
                pl.BlockSpec((rows, 128), lambda i: (i, 0)),
                pl.BlockSpec((rows, 128), lambda i: (i, 0)),
                pl.BlockSpec((rows, pack), lambda i: (i, 0)),
                pl.BlockSpec((128, pack), lambda i: (0, 0)),   # stays resident
            ],
            out_specs=pl.BlockSpec((rows, pack), lambda i: (i, 0)),
            compiler_params=cparams,
            cost_estimate=cost,
        )(p2, d2, beta2, g_mat)
        # Tiny (rows_total, pack) -> (1, B) reshape outside the kernel.
        return jnp.reshape(out, (1, B))

    # ---------------- general-K fallback path ------------------------------
    beta_col = jnp.reshape(beta_flat, (B, 1))              # contiguous (free) reshape
    sub = max(_sublane(p_u.dtype), _sublane(d_v.dtype),
              _sublane(beta_col.dtype), _sublane(out_dtype))
    padded_k = _round_up(K, 128)                           # lane padding in VMEM
    bytes_per_row = (padded_k * in_bytes
                     + 128 * beta_col.dtype.itemsize
                     + 128 * out_isz)
    rows = _pick_block_rows(B, sub, bytes_per_row, block_bytes)
    grid = (_cdiv(B, rows),)

    out = pl.pallas_call(
        _mirt_rowdot_kernel,
        out_shape=jax.ShapeDtypeStruct((B, 1), out_dtype),
        grid=grid,
        in_specs=[
            pl.BlockSpec((rows, K), lambda i: (i, 0)),
            pl.BlockSpec((rows, K), lambda i: (i, 0)),
            pl.BlockSpec((rows, 1), lambda i: (i, 0)),
        ],
        out_specs=pl.BlockSpec((rows, 1), lambda i: (i, 0)),
        compiler_params=cparams,
        cost_estimate=cost,
    )(p_u, d_v, beta_col)
    return jnp.reshape(out, (1, B))


# --------------------------------------------------------------------------- #
# Reference + tests
# --------------------------------------------------------------------------- #
def _reference(p_u, d_v, beta_v):
    if p_u.ndim == 1:
        p_u = p_u[None, :]
    if d_v.ndim == 1:
        d_v = d_v[None, :]
    beta = jnp.reshape(beta_v, (1, -1)).astype(jnp.float32)
    dots = jnp.sum(p_u.astype(jnp.float32) * d_v.astype(jnp.float32), axis=-1)
    return jax.nn.sigmoid(dots[None, :] + beta)


if __name__ == "__main__":
    key = jax.random.PRNGKey(0)
    ks = jax.random.split(key, 12)

    def check(out, ref, tag, atol=1e-5):
        assert out.shape == ref.shape, (tag, out.shape, ref.shape)
        assert jnp.allclose(out, ref, atol=atol, rtol=1e-5), tag

    # 1) canonical small shape (batch=8 interactions, latent=32); force the
    #    packed kernel path even though it is below the jnp-fallback threshold.
    B, K = 8, 32
    p = jax.random.normal(ks[0], (B, K), jnp.float32)
    d = jax.random.normal(ks[1], (B, K), jnp.float32)
    b = jax.random.normal(ks[2], (B,), jnp.float32)
    out = jax.block_until_ready(mirt_forward(p, d, b, min_kernel_elements=0))
    check(out, _reference(p, d, b), "packed-small")

    # 2) ragged batch + multi-step grid on the packed path (forced small blocks).
    B2, K2 = 300, 32
    p2 = jax.random.normal(ks[3], (B2, K2), jnp.float32)
    d2 = jax.random.normal(ks[4], (B2, K2), jnp.float32)
    b2 = jax.random.normal(ks[5], (B2,), jnp.float32)
    out2 = jax.block_until_ready(
        mirt_forward(p2, d2, b2, min_kernel_elements=0, block_bytes=64 * 1024))
    check(out2, _reference(p2, d2, b2), "packed-ragged")

    # 3) bf16 inputs fed natively (no wrapper cast); kernel upcasts in-register.
    B3, K3 = 64, 32
    p3 = jax.random.normal(ks[6], (B3, K3), jnp.float32).astype(jnp.bfloat16)
    d3 = jax.random.normal(ks[7], (B3, K3), jnp.float32).astype(jnp.bfloat16)
    b3 = jax.random.normal(ks[8], (B3,), jnp.float32)
    out3 = jax.block_until_ready(mirt_forward(p3, d3, b3, min_kernel_elements=0))
    check(out3, _reference(p3, d3, b3), "packed-bf16")

    # 4) general-K fallback path (K does not divide 128), ragged multi-step grid.
    B4, K4 = 37, 48
    p4 = jax.random.normal(ks[9], (B4, K4), jnp.float32)
    d4 = jax.random.normal(ks[10], (B4, K4), jnp.float32)
    b4 = jax.random.normal(ks[11], (B4,), jnp.float32)
    out4 = jax.block_until_ready(
        mirt_forward(p4, d4, b4, min_kernel_elements=0, block_bytes=64 * 1024))
    check(out4, _reference(p4, d4, b4), "rowdot-fallback")

    # 5) tiny-problem jnp fallback (default threshold) + 1-D input promotion.
    out5 = jax.block_until_ready(mirt_forward(p[0], d[0], b[:1]))
    check(out5, _reference(p[0], d[0], b[:1]), "jnp-fallback")

    print("KERNEL_OK")
</pallas_src>

<mosaic_0001>
module attributes {stable_mosaic.version = 11 : i64} {
  func.func @_mirt_packed_kernel(%arg0: i32, %arg1: memref<2x128xf32, #tpu.memory_space<vmem>>, %arg2: memref<2x128xf32, #tpu.memory_space<vmem>>, %arg3: memref<2x4xf32, #tpu.memory_space<vmem>>, %arg4: memref<128x4xf32, #tpu.memory_space<vmem>>, %arg5: memref<2x4xf32, #tpu.memory_space<vmem>>) attributes {dimension_semantics = [#tpu.dimension_semantics<parallel>], iteration_bounds = array<i64: 1>, scalar_prefetch = 0 : i64, scratch_operands = 0 : i64, tpu.core_type = #tpu.core_type<tc>, window_params = [{transform_indices = @transform_0, window_bounds = array<i64: 2, 128>}, {transform_indices = @transform_1, window_bounds = array<i64: 2, 128>}, {transform_indices = @transform_2, window_bounds = array<i64: 2, 4>}, {pipeline_mode = #tpu.pipeline_mode<synchronous>, transform_indices = @transform_3, window_bounds = array<i64: 128, 4>}, {transform_indices = @transform_4, window_bounds = array<i64: 2, 4>}]} {
    %c0 = arith.constant 0 : index
    %c0_0 = arith.constant 0 : index
    %0 = vector.load %arg1[%c0, %c0_0] : memref<2x128xf32, #tpu.memory_space<vmem>>, vector<2x128xf32>
    %c0_1 = arith.constant 0 : index
    %c0_2 = arith.constant 0 : index
    %1 = vector.load %arg2[%c0_1, %c0_2] : memref<2x128xf32, #tpu.memory_space<vmem>>, vector<2x128xf32>
    %2 = arith.mulf %0, %1 : vector<2x128xf32>
    %c0_3 = arith.constant 0 : index
    %c0_4 = arith.constant 0 : index
    %3 = vector.load %arg4[%c0_3, %c0_4] : memref<128x4xf32, #tpu.memory_space<vmem>>, vector<128x4xf32>
    %cst = arith.constant dense<0.000000e+00> : vector<2x4xf32>
    %4 = tpu.matmul %2, %3, %cst {dimension_numbers = #tpu.dot_dimension_numbers<[1], [0], [0], [1], [0, 0, 1, 1], [], []>} : vector<2x128xf32>, vector<128x4xf32>, vector<2x4xf32> -> vector<2x4xf32>
    %c0_5 = arith.constant 0 : index
    %c0_6 = arith.constant 0 : index
    %5 = vector.load %arg3[%c0_5, %c0_6] : memref<2x4xf32, #tpu.memory_space<vmem>>, vector<2x4xf32>
    %6 = arith.addf %4, %5 : vector<2x4xf32>
    %7 = arith.negf %6 : vector<2x4xf32>
    %8 = math.exp %7 : vector<2x4xf32>
    %cst_7 = arith.constant 1.000000e+00 : f32
    %9 = vector.broadcast %cst_7 : f32 to vector<2x4xf32>
    %10 = arith.addf %9, %8 : vector<2x4xf32>
    %11 = arith.divf %9, %10 : vector<2x4xf32>
    %c0_8 = arith.constant 0 : index
    %c0_9 = arith.constant 0 : index
    %12 = vector.load %arg5[%c0_8, %c0_9] : memref<2x4xf32, #tpu.memory_space<vmem>>, vector<2x4xf32>
    tpu.vector_store %arg5[%c0_8, %c0_9], %11 {strides = array<i32>} : memref<2x4xf32, #tpu.memory_space<vmem>>, vector<2x4xf32>,
    return
  }
  func.func @transform_0(%arg0: i32) -> (i32, i32) {
    %c0_i32 = arith.constant 0 : i32
    %c0_i32_0 = arith.constant 0 : i32
    return %arg0, %c0_i32 : i32, i32
  }
  func.func @transform_1(%arg0: i32) -> (i32, i32) {
    %c0_i32 = arith.constant 0 : i32
    %c0_i32_0 = arith.constant 0 : i32
    return %arg0, %c0_i32 : i32, i32
  }
  func.func @transform_2(%arg0: i32) -> (i32, i32) {
    %c0_i32 = arith.constant 0 : i32
    %c0_i32_0 = arith.constant 0 : i32
    return %arg0, %c0_i32 : i32, i32
  }
  func.func @transform_3(%arg0: i32) -> (i32, i32) {
    %c0_i32 = arith.constant 0 : i32
    %c0_i32_0 = arith.constant 0 : i32
    %c0_i32_1 = arith.constant 0 : i32
    return %c0_i32, %c0_i32_0 : i32, i32
  }
  func.func @transform_4(%arg0: i32) -> (i32, i32) {
    %c0_i32 = arith.constant 0 : i32
    %c0_i32_0 = arith.constant 0 : i32
    return %arg0, %c0_i32 : i32, i32
  }
}

</mosaic_0001>

<llo_original>
// kernel: tpu_custom_call.1
$region0: #{tpu_custom_call.1}
  #allocation0 [shape = 'u32[]', space=smem, size = 0x4, offset = 0x4, fixed_abs, tag = 'smem constant byte address 0x4 - core index']
  #allocation1 [shape = 'u32[144,128]{1,0:T(1,128)}', space=vmem, size = 0x12000, scoped, tag = 'internal scratch']
  %s0 = inlined_call_operand.vmem [shape: f32[2,128], index: 0, kind: input, shape index: {}]
  %s1 = inlined_call_operand.vmem [shape: f32[2,128], index: 1, kind: input, shape index: {}]
  %s2 = inlined_call_operand.vmem [shape: f32[2,4], index: 2, kind: input, shape index: {}]
  %s3 = inlined_call_operand.vmem [shape: f32[128,4], index: 3, kind: input, shape index: {}]
  %s4 = inlined_call_operand.hbm [shape: f32[2,4], index: 4, kind: output, shape index: {}]
  %s5 = sld [smem:[#allocation0]]
  $region26: #{tpu_custom_call.1} parent=0
    _
  %s7 = ssub.s32 1, %s5
  %s8 = scalar_select 0, %s7, %s5
  $region1: #{tpu_custom_call.1} parent=0
    #allocation2 [shape = 'u8[1024]{0}', space=vmem, size = 0x400, scoped, tag = 'output window, operand 0, single buffered']
    #allocation3 [shape = 's32[1]{0}', space=sflag, size = 0x4, scoped, tag = 'scoped memory for tpu_custom_call.1']
    %9 = vsyncpa [#allocation3], 0
    // Predicated region
    $region2: #{tpu_custom_call.1} parent=1 // pred_check
      _
    $region3: #{tpu_custom_call.1} parent=1 // pred_check_branch
      %11 = sbr.rel (0) target = $region5
    $region4: #{tpu_custom_call.1} parent=1 // pred_region
      _
    $region5: #{tpu_custom_call.1} parent=1 // pred_fallthru
      _
    // Predicated region
    $region6: #{tpu_custom_call.1} parent=1 // pred_check
      _
    $region7: #{tpu_custom_call.1} parent=1 // pred_check_branch
      %13 = sbr.rel (0) target = $region9
    $region8: #{tpu_custom_call.1} parent=1 // pred_region
      _
    $region9: #{tpu_custom_call.1} parent=1 // pred_fallthru
      _
    // Predicated region
    $region10: #{tpu_custom_call.1} parent=1 // pred_check
      _
    $region11: #{tpu_custom_call.1} parent=1 // pred_check_branch
      %15 = sbr.rel (0) target = $region13
    $region12: #{tpu_custom_call.1} parent=1 // pred_region
      _
    $region13: #{tpu_custom_call.1} parent=1 // pred_fallthru
      _
    // Predicated region
    $region14: #{tpu_custom_call.1} parent=1 // pred_check
      _
    $region15: #{tpu_custom_call.1} parent=1 // pred_check_branch
      %17 = sbr.rel (0) target = $region17
    $region16: #{tpu_custom_call.1} parent=1 // pred_region
      _
    $region17: #{tpu_custom_call.1} parent=1 // pred_fallthru
      _
    %v18 = vld [vmem:[%s0] sm:$0x3]
    %v19 = vld [vmem:[%s1] sm:$0x3]
    %v20 = vmul.f32 %v18, %v19
    %v21 = vld [vmem:[%s3] sm:$0xff]
    %v22 = vld [vmem:[%s3 + $0x8] sm:$0xff]
    %v23 = vld [vmem:[%s3 + $0x10] sm:$0xff]
    %v24 = vld [vmem:[%s3 + $0x18] sm:$0xff]
    %v25 = vld [vmem:[%s3 + $0x20] sm:$0xff]
    %v26 = vld [vmem:[%s3 + $0x28] sm:$0xff]
    %v27 = vld [vmem:[%s3 + $0x30] sm:$0xff]
    %v28 = vld [vmem:[%s3 + $0x38] sm:$0xff]
    %v29 = vld [vmem:[%s3 + $0x40] sm:$0xff]
    %v30 = vld [vmem:[%s3 + $0x48] sm:$0xff]
    %v31 = vld [vmem:[%s3 + $0x50] sm:$0xff]
    %v32 = vld [vmem:[%s3 + $0x58] sm:$0xff]
    %v33 = vld [vmem:[%s3 + $0x60] sm:$0xff]
    %v34 = vld [vmem:[%s3 + $0x68] sm:$0xff]
    %v35 = vld [vmem:[%s3 + $0x70] sm:$0xff]
    %v36 = vld [vmem:[%s3 + $0x78] sm:$0xff]
    %v37 = vld [vmem:[%s2] sm:$0x3]
    %38 = vmatprep.subr.mxu0 0.0
    %39 = vmatpush1.msra.mxu0 %v21
    %40 = vmatprep.subr.mxu0 0.0
    %41 = vmatpush1.msra.mxu0 %v22
    %42 = vmatprep.subr.mxu0 0.0
    %43 = vmatpush1.msra.mxu0 %v23
    %44 = vmatprep.subr.mxu0 0.0
    %45 = vmatpush1.msra.mxu0 %v24
    %46 = vmatprep.subr.mxu0 0.0
    %47 = vmatpush1.msra.mxu0 %v25
    %48 = vmatprep.subr.mxu0 0.0
    %49 = vmatpush1.msra.mxu0 %v26
    %50 = vmatprep.subr.mxu0 0.0
    %51 = vmatpush1.msra.mxu0 %v27
    %52 = vmatprep.subr.mxu0 0.0
    %53 = vmatpush1.msra.mxu0 %v28
    %54 = vmatprep.subr.mxu0 0.0
    %55 = vmatpush1.msra.mxu0 %v29
    %56 = vmatprep.subr.mxu0 0.0
    %57 = vmatpush1.msra.mxu0 %v30
    %58 = vmatprep.subr.mxu0 0.0
    %59 = vmatpush1.msra.mxu0 %v31
    %60 = vmatprep.subr.mxu0 0.0
    %61 = vmatpush1.msra.mxu0 %v32
    %62 = vmatprep.subr.mxu0 0.0
    %63 = vmatpush1.msra.mxu0 %v33
    %64 = vmatprep.subr.mxu0 0.0
    %65 = vmatpush1.msra.mxu0 %v34
    %66 = vmatprep.subr.mxu0 0.0
    %67 = vmatpush1.msra.mxu0 %v35
    %68 = vmatprep.subr.mxu0 0.0
    %69 = vmatpush1.msra.mxu0 %v36
    %70 = vmatprep.subr.mxu0 0.0
    %71 = vmatpush1.msra.mxu0 0.0
    %72 = vmatprep.subr.mxu0 0.0
    %73 = vmatpush1.msra.mxu0 0.0
    %74 = vmatprep.subr.mxu0 0.0
    %75 = vmatpush1.msra.mxu0 0.0
    %76 = vmatprep.subr.mxu0 0.0
    %77 = vmatpush1.msra.mxu0 0.0
    %78 = vmatprep.subr.mxu0 0.0
    %79 = vmatpush1.msra.mxu0 0.0
    %80 = vmatprep.subr.mxu0 0.0
    %81 = vmatpush1.msra.mxu0 0.0
    %82 = vmatprep.subr.mxu0 0.0
    %83 = vmatpush1.msra.mxu0 0.0
    %84 = vmatprep.subr.mxu0 0.0
    %85 = vmatpush1.msra.mxu0 0.0
    %86 = vmatprep.subr.mxu0 0.0
    %87 = vmatpush1.msra.mxu0 0.0
    %88 = vmatprep.subr.mxu0 0.0
    %89 = vmatpush1.msra.mxu0 0.0
    %90 = vmatprep.subr.mxu0 0.0
    %91 = vmatpush1.msra.mxu0 0.0
    %92 = vmatprep.subr.mxu0 0.0
    %93 = vmatpush1.msra.mxu0 0.0
    %94 = vmatprep.subr.mxu0 0.0
    %95 = vmatpush1.msra.mxu0 0.0
    %96 = vmatprep.subr.mxu0 0.0
    %97 = vmatpush1.msra.mxu0 0.0
    %98 = vmatprep.subr.mxu0 0.0
    %99 = vmatpush1.msra.mxu0 0.0
    %100 = vmatprep.subr.mxu0 0.0
    %101 = vmatpush1.msra.mxu0 0.0
    %102 = vmatprep.mubr.f32.mxu0 0.0
    %103 = vmatmul.mubr.f32.gmra.mrb[0].mxu0 %v20
    %v104 = vpop.f32.mrb[0].mxu0
    %v105 = vadd.f32 %v37, %v104
    %v106 = vpop.f32.mrb[0].mxu0
    %107 = vdwg.mxu0
    %v108 = vxor.u32 %v105, 2147483648
    %v109 = vmul.f32 %v108, 1.442695
    %v110 = vpow.pop %v109
    %v111 = vadd.f32 %v110, 1.0
    %v112 = vrcp.pop %v111
    %v113 = vmul.f32 1.0, %v112
    %vm114 = vcmask 25600
    %115 = vst.msk [vmem:[#allocation2] sm:$0x3] %vm114, %v113
    // Predicated region
    $region18: #{tpu_custom_call.1} parent=1 // pred_check
      _
    $region19: #{tpu_custom_call.1} parent=1 // pred_check_branch
      %117 = sbr.rel (0) target = $region21
    $region20: #{tpu_custom_call.1} parent=1 // pred_region
      %s119 = ssub.s32 32, 32
      %120 = vsyncadd [#allocation3], %s119
      %s122 = sshll.u32 [#allocation2], 4
      %s123 = int_to_ptr.vmem [resolvable:$true] %s122
      %125 = dma.vmem_to_hbm [thread:$0]  %s123, 32, %s4, [#allocation3]
    $region21: #{tpu_custom_call.1} parent=1 // pred_fallthru
      _
    // Predicated region
    $region22: #{tpu_custom_call.1} parent=1 // pred_check
      _
    $region23: #{tpu_custom_call.1} parent=1 // pred_check_branch
      %127 = sbr.rel (0) target = $region25
    $region24: #{tpu_custom_call.1} parent=1 // pred_region
      %128 = dma.done [#allocation3], 32
    $region25: #{tpu_custom_call.1} parent=1 // pred_fallthru
      _
    %129 = vsyncpa [#allocation3], 1

</llo_original>
